<compile_context>
chip_gen: v6e
topology: v6e:2x2x1
jax: 0.10.0
libtpu: 0.0.40
codegen_flags: <defaults>
</compile_context>

<pallas_src>
import functools

import jax
import jax.numpy as jnp
from jax import lax
from jax.experimental import pallas as pl
from jax.experimental.pallas import tpu as pltpu


_RESIDENT_BUDGET = 40 << 20   # conservative VMEM budget (fits v7x's 64 MiB / TC)
_VMEM_CLAMP = 48 << 20        # scoped-VMEM clamp, leaves headroom on v7x


def _apply_blocks(h, w_ref, b_ref, cdtype):
    """Apply the MiniNN blocks stored in w_ref (k,2,D,D) / b_ref (k,2,1,D) to h."""
    k = w_ref.shape[0]

    def one_block(j, h):
        # fc1 -> ReLU (bias add / ReLU in f32 on the VPU)
        z = jnp.dot(h.astype(cdtype), w_ref[j, 0],
                    preferred_element_type=jnp.float32)
        z = jnp.maximum(z + b_ref[j, 0], 0.0)
        # fc2
        h = jnp.dot(z.astype(cdtype), w_ref[j, 1],
                    preferred_element_type=jnp.float32)
        return h + b_ref[j, 1]

    if k <= 32:
        # Fully unrolled with static indices (equivalent to fori_loop(unroll=True)
        # at these trip counts, and guaranteed to lower cleanly).
        for j in range(k):
            h = one_block(j, h)
        return h
    return lax.fori_loop(0, k, one_block, h)


def bigger_nn_resident_kernel(x_ref, w_ref, b_ref, wf_ref, bf_ref, o_ref):
    """Whole weight stack resident in VMEM; grid = (batch_tiles,)."""
    h = _apply_blocks(x_ref[...].astype(jnp.float32), w_ref, b_ref, w_ref.dtype)
    # Final Linear(D, 1): VPU multiply + cross-lane reduce (XLU) instead of a
    # 1-column MXU matmul that would waste result columns.
    out = jnp.sum(h * wf_ref[...].astype(jnp.float32), axis=-1, keepdims=True)
    o_ref[...] = (out + bf_ref[...]).astype(o_ref.dtype)


def bigger_nn_stream_kernel(x_ref, w_ref, b_ref, wf_ref, bf_ref, o_ref, h_ref):
    """k fused MiniNN blocks per grid step; grid = (batch_tiles, n // k)."""
    i = pl.program_id(1)

    @pl.when(i == 0)
    def _init():
        h_ref[...] = x_ref[...].astype(jnp.float32)

    h = _apply_blocks(h_ref[...], w_ref, b_ref, w_ref.dtype)
    h_ref[...] = h

    @pl.when(i == pl.num_programs(1) - 1)
    def _finalize():
        out = jnp.sum(h * wf_ref[...].astype(jnp.float32), axis=-1, keepdims=True)
        o_ref[...] = (out + bf_ref[...]).astype(o_ref.dtype)


def _pick_batch_tile(B, batch_tile):
    """Returns (bt, B_pad). bt divides B_pad; bt is a multiple of 8 or == B."""
    if B <= batch_tile:
        return B, B
    divs = [d for d in range(8, batch_tile + 1, 8) if B % d == 0]
    if divs:
        return max(divs), B
    bt = batch_tile
    return bt, ((B + bt - 1) // bt) * bt


def bigger_nn_forward(x, w1, b1, w2, b2, wf, bf, *,
                      weight_dtype=jnp.bfloat16, batch_tile=256,
                      vmem_budget_bytes=_RESIDENT_BUDGET):
    B, D = x.shape
    n = w1.shape[0]

    w_itemsize = jnp.dtype(weight_dtype).itemsize
    x_itemsize = x.dtype.itemsize

    # Pack both Linears of each MiniNN into single weight/bias tensors
    # (fewer, larger DMAs per step). Weights in weight_dtype, biases f32.
    w = jnp.stack([w1, w2], axis=1).astype(weight_dtype)          # (n, 2, D, D)
    b = jnp.stack([b1, b2], axis=1).astype(jnp.float32)           # (n, 2, 1, D)
    wfc = wf.reshape(1, D).astype(weight_dtype)
    bfc = bf.reshape(1, 1).astype(jnp.float32)

    bt, B_pad = _pick_batch_tile(B, batch_tile)
    n_bt = B_pad // bt
    xp = x if B_pad == B else jnp.pad(x, ((0, B_pad - B), (0, 0)))

    w_bytes_total = n * 2 * D * D * w_itemsize
    b_bytes_total = n * 2 * D * 4
    # resident activations / io per batch tile (x double-buffered, h scratch, out)
    act_bytes = (2 * bt * D * x_itemsize + bt * D * 4 + 2 * bt * x_itemsize
                 + D * w_itemsize + 4)

    resident = (w_bytes_total + b_bytes_total + act_bytes) <= vmem_budget_bytes

    if resident:
        grid = (n_bt,)
        in_specs = [
            pl.BlockSpec((bt, D), lambda bi: (bi, 0)),             # x tile
            pl.BlockSpec((n, 2, D, D), lambda bi: (0, 0, 0, 0)),   # all weights
            pl.BlockSpec((n, 2, 1, D), lambda bi: (0, 0, 0, 0)),   # all biases
            pl.BlockSpec((1, D), lambda bi: (0, 0)),               # wf
            pl.BlockSpec((1, 1), lambda bi: (0, 0)),               # bf
        ]
        out_spec = pl.BlockSpec((bt, 1), lambda bi: (bi, 0))
        scratch = []
        kernel = bigger_nn_resident_kernel
        dims = ("parallel",)
        vmem_est = w_bytes_total + b_bytes_total + act_bytes
        weight_rereads = 1
    else:
        # Fuse k MiniNN blocks per grid step (k divides n), sized so the
        # double-buffered weight group stays under the VMEM budget.
        k = 1
        for cand in range(n, 0, -1):
            if n % cand != 0:
                continue
            step_bytes = 2 * cand * (2 * D * D * w_itemsize + 2 * D * 4) + act_bytes
            if step_bytes <= vmem_budget_bytes:
                k = cand
                break
        grid = (n_bt, n // k)
        in_specs = [
            pl.BlockSpec((bt, D), lambda bi, i: (bi, 0)),             # x (resident over i)
            pl.BlockSpec((k, 2, D, D), lambda bi, i: (i, 0, 0, 0)),   # k blocks' weights
            pl.BlockSpec((k, 2, 1, D), lambda bi, i: (i, 0, 0, 0)),   # k blocks' biases
            pl.BlockSpec((1, D), lambda bi, i: (0, 0)),               # wf
            pl.BlockSpec((1, 1), lambda bi, i: (0, 0)),               # bf
        ]
        out_spec = pl.BlockSpec((bt, 1), lambda bi, i: (bi, 0))
        scratch = [pltpu.VMEM((bt, D), jnp.float32)]
        kernel = bigger_nn_stream_kernel
        dims = ("parallel", "arbitrary")
        vmem_est = 2 * k * (2 * D * D * w_itemsize + 2 * D * 4) + act_bytes
        weight_rereads = n_bt   # b-outer grid re-streams weights per batch tile

    vmem_limit = int(min(max(int(1.25 * vmem_est) + (2 << 20), 8 << 20), _VMEM_CLAMP))

    flops = n * 2 * (2 * B_pad * D * D) + 2 * B_pad * D
    bytes_accessed = (weight_rereads * (w_bytes_total + b_bytes_total)
                      + xp.size * x_itemsize + B_pad * x_itemsize
                      + D * w_itemsize + 4)

    out = pl.pallas_call(
        kernel,
        out_shape=jax.ShapeDtypeStruct((B_pad, 1), x.dtype),
        grid_spec=pltpu.PrefetchScalarGridSpec(
            num_scalar_prefetch=0,
            grid=grid,
            in_specs=in_specs,
            out_specs=out_spec,
            scratch_shapes=scratch,
        ),
        compiler_params=pltpu.CompilerParams(
            dimension_semantics=dims,
            vmem_limit_bytes=vmem_limit,
        ),
        cost_estimate=pl.CostEstimate(flops=flops, transcendentals=0,
                                      bytes_accessed=bytes_accessed),
    )(xp, w, b, wfc, bfc)

    return out[:B] if B_pad != B else out


def init_params(key, n, D):
    """Deterministic init mirroring nn.Linear's U(-1/sqrt(fan_in), 1/sqrt(fan_in))."""
    keys = jax.random.split(key, 4 * n + 2)
    bound = 1.0 / jnp.sqrt(D)
    w1 = jnp.stack([jax.random.uniform(keys[4 * i + 0], (D, D), jnp.float32, -bound, bound)
                    for i in range(n)])          # (n, D, D), already (in, out)
    b1 = jnp.stack([jax.random.uniform(keys[4 * i + 1], (1, D), jnp.float32, -bound, bound)
                    for i in range(n)])          # (n, 1, D)
    w2 = jnp.stack([jax.random.uniform(keys[4 * i + 2], (D, D), jnp.float32, -bound, bound)
                    for i in range(n)])          # (n, D, D)
    b2 = jnp.stack([jax.random.uniform(keys[4 * i + 3], (1, D), jnp.float32, -bound, bound)
                    for i in range(n)])          # (n, 1, D)
    wf = jax.random.uniform(keys[-2], (D, 1), jnp.float32, -bound, bound)   # (D, 1)
    bf = jax.random.uniform(keys[-1], (1, 1), jnp.float32, -bound, bound)   # (1, 1)
    return w1, b1, w2, b2, wf, bf


def reference_forward(x, w1, b1, w2, b2, wf, bf, weight_dtype=jnp.float32):
    """Pure-JAX reference using the same precision policy as the kernel."""
    h = x.astype(jnp.float32)
    for i in range(w1.shape[0]):
        z = jnp.dot(h.astype(weight_dtype), w1[i].astype(weight_dtype),
                    preferred_element_type=jnp.float32) + b1[i]
        z = jnp.maximum(z, 0.0)
        h = jnp.dot(z.astype(weight_dtype), w2[i].astype(weight_dtype),
                    preferred_element_type=jnp.float32) + b2[i]
    wf_row = wf.reshape(1, -1).astype(weight_dtype).astype(jnp.float32)
    return jnp.sum(h * wf_row, axis=-1, keepdims=True) + bf.reshape(1, 1)


if __name__ == "__main__":
    # --- 1) toy shapes, f32 weights, resident path: exact semantics check ---
    n, D, B = 3, 32, 8
    key = jax.random.PRNGKey(0)
    kx, kp = jax.random.split(key)
    x = jax.random.normal(kx, (B, D), jnp.float32)
    params = init_params(kp, n, D)

    fwd_f32 = jax.jit(functools.partial(bigger_nn_forward, weight_dtype=jnp.float32))
    out = jax.block_until_ready(fwd_f32(x, *params))
    ref = reference_forward(x, *params, weight_dtype=jnp.float32)
    assert out.shape == (B, 1)
    assert jnp.allclose(out, ref, atol=1e-4, rtol=1e-4), "f32 resident mismatch"

    # --- 2) MXU-shaped run: bf16 weights / f32 accum, resident path ---
    n2, D2, B2 = 4, 256, 256
    kx2, kp2 = jax.random.split(jax.random.PRNGKey(0))
    x2 = jax.random.normal(kx2, (B2, D2), jnp.float32)
    params2 = init_params(kp2, n2, D2)

    fwd_bf16 = jax.jit(functools.partial(bigger_nn_forward, weight_dtype=jnp.bfloat16))
    out2 = jax.block_until_ready(fwd_bf16(x2, *params2))
    ref2 = reference_forward(x2, *params2, weight_dtype=jnp.bfloat16)
    assert out2.shape == (B2, 1)
    assert jnp.allclose(out2, ref2, atol=1e-2, rtol=1e-2), "bf16 resident mismatch"

    # --- 3) force the streaming path + batch padding (B not divisible by tile) ---
    n3, D3, B3 = 4, 128, 20
    kx3, kp3 = jax.random.split(jax.random.PRNGKey(0))
    x3 = jax.random.normal(kx3, (B3, D3), jnp.float32)
    params3 = init_params(kp3, n3, D3)

    fwd_stream = jax.jit(functools.partial(
        bigger_nn_forward, weight_dtype=jnp.float32, batch_tile=16,
        vmem_budget_bytes=1))            # tiny budget -> streaming, k=1
    out3 = jax.block_until_ready(fwd_stream(x3, *params3))
    ref3 = reference_forward(x3, *params3, weight_dtype=jnp.float32)
    assert out3.shape == (B3, 1)
    assert jnp.allclose(out3, ref3, atol=1e-4, rtol=1e-4), "f32 streaming mismatch"

    print("KERNEL_OK")
</pallas_src>

<mosaic_0001>
module attributes {stable_mosaic.version = 11 : i64} {
  func.func @bigger_nn_resident_kernel(%arg0: i32, %arg1: memref<8x32xf32, #tpu.memory_space<vmem>>, %arg2: memref<3x2x32x32xf32, #tpu.memory_space<vmem>>, %arg3: memref<3x2x1x32xf32, #tpu.memory_space<vmem>>, %arg4: memref<1x32xf32, #tpu.memory_space<vmem>>, %arg5: memref<1x1xf32, #tpu.memory_space<vmem>>, %arg6: memref<8x1xf32, #tpu.memory_space<vmem>>) attributes {dimension_semantics = [#tpu.dimension_semantics<parallel>], iteration_bounds = array<i64: 1>, scalar_prefetch = 0 : i64, scratch_operands = 0 : i64, tpu.core_type = #tpu.core_type<tc>, window_params = [{transform_indices = @transform_0, window_bounds = array<i64: 8, 32>}, {pipeline_mode = #tpu.pipeline_mode<synchronous>, transform_indices = @transform_1, window_bounds = array<i64: 3, 2, 32, 32>}, {pipeline_mode = #tpu.pipeline_mode<synchronous>, transform_indices = @transform_2, window_bounds = array<i64: 3, 2, 1, 32>}, {pipeline_mode = #tpu.pipeline_mode<synchronous>, transform_indices = @transform_3, window_bounds = array<i64: 1, 32>}, {pipeline_mode = #tpu.pipeline_mode<synchronous>, transform_indices = @transform_4, window_bounds = array<i64: 1, 1>}, {transform_indices = @transform_5, window_bounds = array<i64: 8, 1>}]} {
    %c0 = arith.constant 0 : index
    %c0_0 = arith.constant 0 : index
    %0 = vector.load %arg1[%c0, %c0_0] : memref<8x32xf32, #tpu.memory_space<vmem>>, vector<8x32xf32>
    %c0_1 = arith.constant 0 : index
    %c0_2 = arith.constant 0 : index
    %c0_3 = arith.constant 0 : index
    %c0_4 = arith.constant 0 : index
    %1 = vector.load %arg2[%c0_1, %c0_2, %c0_3, %c0_4] : memref<3x2x32x32xf32, #tpu.memory_space<vmem>>, vector<1x1x32x32xf32>
    %2 = vector.shape_cast %1 : vector<1x1x32x32xf32> to vector<32x32xf32>
    %cst = arith.constant dense<0.000000e+00> : vector<8x32xf32>
    %3 = tpu.matmul %0, %2, %cst {dimension_numbers = #tpu.dot_dimension_numbers<[1], [0], [0], [1], [0, 0, 1, 1], [], []>} : vector<8x32xf32>, vector<32x32xf32>, vector<8x32xf32> -> vector<8x32xf32>
    %c0_5 = arith.constant 0 : index
    %c0_6 = arith.constant 0 : index
    %c0_7 = arith.constant 0 : index
    %c0_8 = arith.constant 0 : index
    %4 = vector.load %arg3[%c0_5, %c0_6, %c0_7, %c0_8] : memref<3x2x1x32xf32, #tpu.memory_space<vmem>>, vector<1x1x1x32xf32>
    %5 = vector.shape_cast %4 : vector<1x1x1x32xf32> to vector<1x32xf32>
    %6 = vector.broadcast %5 : vector<1x32xf32> to vector<8x32xf32>
    %7 = arith.addf %3, %6 : vector<8x32xf32>
    %cst_9 = arith.constant 0.000000e+00 : f32
    %8 = vector.broadcast %cst_9 : f32 to vector<8x32xf32>
    %9 = arith.maximumf %7, %8 : vector<8x32xf32>
    %c0_10 = arith.constant 0 : index
    %c1 = arith.constant 1 : index
    %c0_11 = arith.constant 0 : index
    %c0_12 = arith.constant 0 : index
    %10 = vector.load %arg2[%c0_10, %c1, %c0_11, %c0_12] : memref<3x2x32x32xf32, #tpu.memory_space<vmem>>, vector<1x1x32x32xf32>
    %11 = vector.shape_cast %10 : vector<1x1x32x32xf32> to vector<32x32xf32>
    %cst_13 = arith.constant dense<0.000000e+00> : vector<8x32xf32>
    %12 = tpu.matmul %9, %11, %cst_13 {dimension_numbers = #tpu.dot_dimension_numbers<[1], [0], [0], [1], [0, 0, 1, 1], [], []>} : vector<8x32xf32>, vector<32x32xf32>, vector<8x32xf32> -> vector<8x32xf32>
    %c0_14 = arith.constant 0 : index
    %c1_15 = arith.constant 1 : index
    %c0_16 = arith.constant 0 : index
    %c0_17 = arith.constant 0 : index
    %13 = vector.load %arg3[%c0_14, %c1_15, %c0_16, %c0_17] : memref<3x2x1x32xf32, #tpu.memory_space<vmem>>, vector<1x1x1x32xf32>
    %14 = vector.shape_cast %13 : vector<1x1x1x32xf32> to vector<1x32xf32>
    %15 = vector.broadcast %14 : vector<1x32xf32> to vector<8x32xf32>
    %16 = arith.addf %12, %15 : vector<8x32xf32>
    %c1_18 = arith.constant 1 : index
    %c0_19 = arith.constant 0 : index
    %c0_20 = arith.constant 0 : index
    %c0_21 = arith.constant 0 : index
    %17 = vector.load %arg2[%c1_18, %c0_19, %c0_20, %c0_21] : memref<3x2x32x32xf32, #tpu.memory_space<vmem>>, vector<1x1x32x32xf32>
    %18 = vector.shape_cast %17 : vector<1x1x32x32xf32> to vector<32x32xf32>
    %cst_22 = arith.constant dense<0.000000e+00> : vector<8x32xf32>
    %19 = tpu.matmul %16, %18, %cst_22 {dimension_numbers = #tpu.dot_dimension_numbers<[1], [0], [0], [1], [0, 0, 1, 1], [], []>} : vector<8x32xf32>, vector<32x32xf32>, vector<8x32xf32> -> vector<8x32xf32>
    %c1_23 = arith.constant 1 : index
    %c0_24 = arith.constant 0 : index
    %c0_25 = arith.constant 0 : index
    %c0_26 = arith.constant 0 : index
    %20 = vector.load %arg3[%c1_23, %c0_24, %c0_25, %c0_26] : memref<3x2x1x32xf32, #tpu.memory_space<vmem>>, vector<1x1x1x32xf32>
    %21 = vector.shape_cast %20 : vector<1x1x1x32xf32> to vector<1x32xf32>
    %22 = vector.broadcast %21 : vector<1x32xf32> to vector<8x32xf32>
    %23 = arith.addf %19, %22 : vector<8x32xf32>
    %cst_27 = arith.constant 0.000000e+00 : f32
    %24 = vector.broadcast %cst_27 : f32 to vector<8x32xf32>
    %25 = arith.maximumf %23, %24 : vector<8x32xf32>
    %c1_28 = arith.constant 1 : index
    %c1_29 = arith.constant 1 : index
    %c0_30 = arith.constant 0 : index
    %c0_31 = arith.constant 0 : index
    %26 = vector.load %arg2[%c1_28, %c1_29, %c0_30, %c0_31] : memref<3x2x32x32xf32, #tpu.memory_space<vmem>>, vector<1x1x32x32xf32>
    %27 = vector.shape_cast %26 : vector<1x1x32x32xf32> to vector<32x32xf32>
    %cst_32 = arith.constant dense<0.000000e+00> : vector<8x32xf32>
    %28 = tpu.matmul %25, %27, %cst_32 {dimension_numbers = #tpu.dot_dimension_numbers<[1], [0], [0], [1], [0, 0, 1, 1], [], []>} : vector<8x32xf32>, vector<32x32xf32>, vector<8x32xf32> -> vector<8x32xf32>
    %c1_33 = arith.constant 1 : index
    %c1_34 = arith.constant 1 : index
    %c0_35 = arith.constant 0 : index
    %c0_36 = arith.constant 0 : index
    %29 = vector.load %arg3[%c1_33, %c1_34, %c0_35, %c0_36] : memref<3x2x1x32xf32, #tpu.memory_space<vmem>>, vector<1x1x1x32xf32>
    %30 = vector.shape_cast %29 : vector<1x1x1x32xf32> to vector<1x32xf32>
    %31 = vector.broadcast %30 : vector<1x32xf32> to vector<8x32xf32>
    %32 = arith.addf %28, %31 : vector<8x32xf32>
    %c2 = arith.constant 2 : index
    %c0_37 = arith.constant 0 : index
    %c0_38 = arith.constant 0 : index
    %c0_39 = arith.constant 0 : index
    %33 = vector.load %arg2[%c2, %c0_37, %c0_38, %c0_39] : memref<3x2x32x32xf32, #tpu.memory_space<vmem>>, vector<1x1x32x32xf32>
    %34 = vector.shape_cast %33 : vector<1x1x32x32xf32> to vector<32x32xf32>
    %cst_40 = arith.constant dense<0.000000e+00> : vector<8x32xf32>
    %35 = tpu.matmul %32, %34, %cst_40 {dimension_numbers = #tpu.dot_dimension_numbers<[1], [0], [0], [1], [0, 0, 1, 1], [], []>} : vector<8x32xf32>, vector<32x32xf32>, vector<8x32xf32> -> vector<8x32xf32>
    %c2_41 = arith.constant 2 : index
    %c0_42 = arith.constant 0 : index
    %c0_43 = arith.constant 0 : index
    %c0_44 = arith.constant 0 : index
    %36 = vector.load %arg3[%c2_41, %c0_42, %c0_43, %c0_44] : memref<3x2x1x32xf32, #tpu.memory_space<vmem>>, vector<1x1x1x32xf32>
    %37 = vector.shape_cast %36 : vector<1x1x1x32xf32> to vector<1x32xf32>
    %38 = vector.broadcast %37 : vector<1x32xf32> to vector<8x32xf32>
    %39 = arith.addf %35, %38 : vector<8x32xf32>
    %cst_45 = arith.constant 0.000000e+00 : f32
    %40 = vector.broadcast %cst_45 : f32 to vector<8x32xf32>
    %41 = arith.maximumf %39, %40 : vector<8x32xf32>
    %c2_46 = arith.constant 2 : index
    %c1_47 = arith.constant 1 : index
    %c0_48 = arith.constant 0 : index
    %c0_49 = arith.constant 0 : index
    %42 = vector.load %arg2[%c2_46, %c1_47, %c0_48, %c0_49] : memref<3x2x32x32xf32, #tpu.memory_space<vmem>>, vector<1x1x32x32xf32>
    %43 = vector.shape_cast %42 : vector<1x1x32x32xf32> to vector<32x32xf32>
    %cst_50 = arith.constant dense<0.000000e+00> : vector<8x32xf32>
    %44 = tpu.matmul %41, %43, %cst_50 {dimension_numbers = #tpu.dot_dimension_numbers<[1], [0], [0], [1], [0, 0, 1, 1], [], []>} : vector<8x32xf32>, vector<32x32xf32>, vector<8x32xf32> -> vector<8x32xf32>
    %c2_51 = arith.constant 2 : index
    %c1_52 = arith.constant 1 : index
    %c0_53 = arith.constant 0 : index
    %c0_54 = arith.constant 0 : index
    %45 = vector.load %arg3[%c2_51, %c1_52, %c0_53, %c0_54] : memref<3x2x1x32xf32, #tpu.memory_space<vmem>>, vector<1x1x1x32xf32>
    %46 = vector.shape_cast %45 : vector<1x1x1x32xf32> to vector<1x32xf32>
    %47 = vector.broadcast %46 : vector<1x32xf32> to vector<8x32xf32>
    %48 = arith.addf %44, %47 : vector<8x32xf32>
    %c0_55 = arith.constant 0 : index
    %c0_56 = arith.constant 0 : index
    %49 = vector.load %arg4[%c0_55, %c0_56] : memref<1x32xf32, #tpu.memory_space<vmem>>, vector<1x32xf32>
    %50 = vector.broadcast %49 : vector<1x32xf32> to vector<8x32xf32>
    %51 = arith.mulf %48, %50 : vector<8x32xf32>
    %cst_57 = arith.constant dense<0.000000e+00> : vector<8xf32>
    %52 = vector.multi_reduction <add>, %51, %cst_57 [1] : vector<8x32xf32> to vector<8xf32>
    %53 = vector.shape_cast %52 : vector<8xf32> to vector<8x1xf32>
    %c0_58 = arith.constant 0 : index
    %c0_59 = arith.constant 0 : index
    %54 = vector.load %arg5[%c0_58, %c0_59] : memref<1x1xf32, #tpu.memory_space<vmem>>, vector<1x1xf32>
    %55 = vector.broadcast %54 : vector<1x1xf32> to vector<8x1xf32>
    %56 = arith.addf %53, %55 : vector<8x1xf32>
    %c0_60 = arith.constant 0 : index
    %c0_61 = arith.constant 0 : index
    %57 = vector.load %arg6[%c0_60, %c0_61] : memref<8x1xf32, #tpu.memory_space<vmem>>, vector<8x1xf32>
    tpu.vector_store %arg6[%c0_60, %c0_61], %56 {strides = array<i32>} : memref<8x1xf32, #tpu.memory_space<vmem>>, vector<8x1xf32>,
    return
  }
  func.func @transform_0(%arg0: i32) -> (i32, i32) {
    %c0_i32 = arith.constant 0 : i32
    %c0_i32_0 = arith.constant 0 : i32
    return %arg0, %c0_i32 : i32, i32
  }
  func.func @transform_1(%arg0: i32) -> (i32, i32, i32, i32) {
    %c0_i32 = arith.constant 0 : i32
    %c0_i32_0 = arith.constant 0 : i32
    %c0_i32_1 = arith.constant 0 : i32
    %c0_i32_2 = arith.constant 0 : i32
    %c0_i32_3 = arith.constant 0 : i32
    return %c0_i32, %c0_i32_0, %c0_i32_1, %c0_i32_2 : i32, i32, i32, i32
  }
  func.func @transform_2(%arg0: i32) -> (i32, i32, i32, i32) {
    %c0_i32 = arith.constant 0 : i32
    %c0_i32_0 = arith.constant 0 : i32
    %c0_i32_1 = arith.constant 0 : i32
    %c0_i32_2 = arith.constant 0 : i32
    %c0_i32_3 = arith.constant 0 : i32
    return %c0_i32, %c0_i32_0, %c0_i32_1, %c0_i32_2 : i32, i32, i32, i32
  }
  func.func @transform_3(%arg0: i32) -> (i32, i32) {
    %c0_i32 = arith.constant 0 : i32
    %c0_i32_0 = arith.constant 0 : i32
    %c0_i32_1 = arith.constant 0 : i32
    return %c0_i32, %c0_i32_0 : i32, i32
  }
  func.func @transform_4(%arg0: i32) -> (i32, i32) {
    %c0_i32 = arith.constant 0 : i32
    %c0_i32_0 = arith.constant 0 : i32
    %c0_i32_1 = arith.constant 0 : i32
    return %c0_i32, %c0_i32_0 : i32, i32
  }
  func.func @transform_5(%arg0: i32) -> (i32, i32) {
    %c0_i32 = arith.constant 0 : i32
    %c0_i32_0 = arith.constant 0 : i32
    return %arg0, %c0_i32 : i32, i32
  }
}

</mosaic_0001>

<llo_original>
// kernel: bigger_nn_forward.1
$region0: #{bigger_nn_forward.1}
  #allocation0 [shape = 'u32[]', space=smem, size = 0x4, offset = 0x4, fixed_abs, tag = 'smem constant byte address 0x4 - core index']
  #allocation1 [shape = 'u32[144,128]{1,0:T(1,128)}', space=vmem, size = 0x12000, scoped, tag = 'internal scratch']
  #allocation2 [shape = 'f32[1,1]{1,0:T(1,128)S(1)}', space=vmem, size = 0x200, scoped, tag = 'scoped memory for bigger_nn_forward.1']
  %s0 = inlined_call_operand.vmem [shape: f32[8,32], index: 0, kind: input, shape index: {}]
  %s1 = inlined_call_operand.vmem [shape: f32[3,2,32,32], index: 1, kind: input, shape index: {}]
  %s2 = inlined_call_operand.vmem [shape: f32[3,2,1,32], index: 2, kind: input, shape index: {}]
  %s3 = inlined_call_operand.vmem [shape: f32[1,32], index: 3, kind: input, shape index: {}]
  %s4 = inlined_call_operand.<no memory space> [shape: f32[1,1], index: 4, kind: input, shape index: {}]
  %s5 = inlined_call_operand.vmem [shape: f32[8,1], index: 5, kind: output, shape index: {}]
  %s6 = sld [smem:[#allocation0]]
  $region30: #{bigger_nn_forward.1} parent=0
    _
  %s8 = ssub.s32 1, %s6
  %s9 = scalar_select 0, %s8, %s6
  %v10 = vstv %s4
  %11 = vst [vmem:[#allocation2] sm:$0x1] %v10
  // Predicated region
  $region2: #{bigger_nn_forward.1} parent=0 // pred_check
    _
  $region3: #{bigger_nn_forward.1} parent=0 // pred_check_branch
    %13 = sbr.rel (0) target = $region5
  $region4: #{bigger_nn_forward.1} parent=0 // pred_region
    _
  $region5: #{bigger_nn_forward.1} parent=0 // pred_fallthru
    _
  // Predicated region
  $region6: #{bigger_nn_forward.1} parent=0 // pred_check
    _
  $region7: #{bigger_nn_forward.1} parent=0 // pred_check_branch
    %15 = sbr.rel (0) target = $region9
  $region8: #{bigger_nn_forward.1} parent=0 // pred_region
    _
  $region9: #{bigger_nn_forward.1} parent=0 // pred_fallthru
    _
  // Predicated region
  $region10: #{bigger_nn_forward.1} parent=0 // pred_check
    _
  $region11: #{bigger_nn_forward.1} parent=0 // pred_check_branch
    %17 = sbr.rel (0) target = $region13
  $region12: #{bigger_nn_forward.1} parent=0 // pred_region
    _
  $region13: #{bigger_nn_forward.1} parent=0 // pred_fallthru
    _
  // Predicated region
  $region14: #{bigger_nn_forward.1} parent=0 // pred_check
    _
  $region15: #{bigger_nn_forward.1} parent=0 // pred_check_branch
    %19 = sbr.rel (0) target = $region17
  $region16: #{bigger_nn_forward.1} parent=0 // pred_region
    _
  $region17: #{bigger_nn_forward.1} parent=0 // pred_fallthru
    _
  // Predicated region
  $region18: #{bigger_nn_forward.1} parent=0 // pred_check
    _
  $region19: #{bigger_nn_forward.1} parent=0 // pred_check_branch
    %21 = sbr.rel (0) target = $region21
  $region20: #{bigger_nn_forward.1} parent=0 // pred_region
    _
  $region21: #{bigger_nn_forward.1} parent=0 // pred_fallthru
    _
  %v22 = vld [vmem:[%s0] sm:$0xff]
  %v23 = vld [vmem:[%s1] sm:$0xff]
  %v24 = vld [vmem:[%s1 + $0x8] sm:$0xff]
  %v25 = vld [vmem:[%s1 + $0x10] sm:$0xff]
  %v26 = vld [vmem:[%s1 + $0x18] sm:$0xff]
  %v27 = vld [vmem:[%s2] sm:$0x1]
  %v29 = vlaneseq
  %v30 = vshrl.u32 %v29, 7
  %v31 = vsub.s32 0, %v30
  %v32 = vrot.slane %v27, %v31
  %vm34 = vcmask 261120
  %v36 = vsel %vm34, %v22, 0
  %38 = vmatprep.subr.mxu0 0.0
  %39 = vmatpush1.msra.mxu0 0.0
  %40 = vmatprep.subr.mxu0 0.0
  %41 = vmatpush1.msra.mxu0 0.0
  %42 = vmatprep.subr.mxu0 0.0
  %43 = vmatpush1.msra.mxu0 0.0
  %44 = vmatprep.subr.mxu0 0.0
  %45 = vmatpush1.msra.mxu0 0.0
  %46 = vmatprep.subr.mxu0 0.0
  %47 = vmatpush1.msra.mxu0 0.0
  %48 = vmatprep.subr.mxu0 0.0
  %49 = vmatpush1.msra.mxu0 0.0
  %50 = vmatprep.subr.mxu0 0.0
  %51 = vmatpush1.msra.mxu0 0.0
  %52 = vmatprep.subr.mxu0 0.0
  %53 = vmatpush1.msra.mxu0 0.0
  %54 = vmatprep.subr.mxu0 0.0
  %55 = vmatpush1.msra.mxu0 0.0
  %56 = vmatprep.subr.mxu0 0.0
  %57 = vmatpush1.msra.mxu0 0.0
  %58 = vmatprep.subr.mxu0 0.0
  %59 = vmatpush1.msra.mxu0 0.0
  %60 = vmatprep.subr.mxu0 0.0
  %61 = vmatpush1.msra.mxu0 0.0
  %62 = vmatprep.subr.mxu0 0.0
  %63 = vmatpush1.msra.mxu0 %v26
  %64 = vmatprep.subr.mxu0 0.0
  %65 = vmatpush1.msra.mxu0 %v25
  %66 = vmatprep.subr.mxu0 0.0
  %67 = vmatpush1.msra.mxu0 %v24
  %68 = vmatprep.subr.mxu0 0.0
  %69 = vmatpush1.msra.mxu0 %v23
  %70 = vmatprep.subr.mxu0 0.0
  %71 = vmatpush2.msra.mxu0 0.0
  %72 = vmatprep.subr.mxu0 0.0
  %73 = vmatpush2.msra.mxu0 0.0
  %74 = vmatprep.subr.mxu0 0.0
  %75 = vmatpush2.msra.mxu0 0.0
  %76 = vmatprep.subr.mxu0 0.0
  %77 = vmatpush2.msra.mxu0 0.0
  %78 = vmatprep.subr.mxu0 0.0
  %79 = vmatpush2.msra.mxu0 0.0
  %80 = vmatprep.subr.mxu0 0.0
  %81 = vmatpush2.msra.mxu0 0.0
  %82 = vmatprep.subr.mxu0 0.0
  %83 = vmatpush2.msra.mxu0 0.0
  %84 = vmatprep.subr.mxu0 0.0
  %85 = vmatpush2.msra.mxu0 0.0
  %86 = vmatprep.subr.mxu0 0.0
  %87 = vmatpush2.msra.mxu0 0.0
  %88 = vmatprep.subr.mxu0 0.0
  %89 = vmatpush2.msra.mxu0 0.0
  %90 = vmatprep.subr.mxu0 0.0
  %91 = vmatpush2.msra.mxu0 0.0
  %92 = vmatprep.subr.mxu0 0.0
  %93 = vmatpush2.msra.mxu0 0.0
  %94 = vmatprep.subr.mxu0 0.0
  %95 = vmatpush2.msra.mxu0 0.0
  %96 = vmatprep.subr.mxu0 0.0
  %97 = vmatpush2.msra.mxu0 0.0
  %98 = vmatprep.subr.mxu0 0.0
  %99 = vmatpush2.msra.mxu0 0.0
  %100 = vmatprep.subr.mxu0 0.0
  %101 = vmatpush2.msra.mxu0 0.0
  %102 = vmatprep.mubr.f32.mxu0 0.0
  %103 = vmatmul.mubr.f32.gmra.mxu0 %v36
  %v104 = vpop.f32.mrf.mxu0
  %v105 = vadd.f32 %v32, %v104
  %v106 = vpop.f32.mrf.mxu0
  %107 = vdwg.mxu0
  %v108 = vmax.f32 %v105, 0.0
  %s109 = scalar_lea.vmem %s1, 32
  %v110 = vld [vmem:[%s109] sm:$0xff]
  %v111 = vld [vmem:[%s109 + $0x8] sm:$0xff]
  %v112 = vld [vmem:[%s109 + $0x10] sm:$0xff]
  %v113 = vld [vmem:[%s109 + $0x18] sm:$0xff]
  %s114 = scalar_lea.vmem %s2, 1
  %v115 = vld [vmem:[%s114] sm:$0x1]
  %v117 = vlaneseq
  %v118 = vshrl.u32 %v117, 7
  %v119 = vsub.s32 0, %v118
  %v120 = vrot.slane %v115, %v119
  %v123 = vsel %vm34, %v108, 0
  %125 = vmatprep.subr.mxu0 0.0
  %126 = vmatpush1.msra.mxu0 0.0
  %127 = vmatprep.subr.mxu0 0.0
  %128 = vmatpush1.msra.mxu0 0.0
  %129 = vmatprep.subr.mxu0 0.0
  %130 = vmatpush1.msra.mxu0 0.0
  %131 = vmatprep.subr.mxu0 0.0
  %132 = vmatpush1.msra.mxu0 0.0
  %133 = vmatprep.subr.mxu0 0.0
  %134 = vmatpush1.msra.mxu0 0.0
  %135 = vmatprep.subr.mxu0 0.0
  %136 = vmatpush1.msra.mxu0 0.0
  %137 = vmatprep.subr.mxu0 0.0
  %138 = vmatpush1.msra.mxu0 0.0
  %139 = vmatprep.subr.mxu0 0.0
  %140 = vmatpush1.msra.mxu0 0.0
  %141 = vmatprep.subr.mxu0 0.0
  %142 = vmatpush1.msra.mxu0 0.0
  %143 = vmatprep.subr.mxu0 0.0
  %144 = vmatpush1.msra.mxu0 0.0
  %145 = vmatprep.subr.mxu0 0.0
  %146 = vmatpush1.msra.mxu0 0.0
  %147 = vmatprep.subr.mxu0 0.0
  %148 = vmatpush1.msra.mxu0 0.0
  %149 = vmatprep.subr.mxu0 0.0
  %150 = vmatpush1.msra.mxu0 %v113
  %151 = vmatprep.subr.mxu0 0.0
  %152 = vmatpush1.msra.mxu0 %v112
  %153 = vmatprep.subr.mxu0 0.0
  %154 = vmatpush1.msra.mxu0 %v111
  %155 = vmatprep.subr.mxu0 0.0
  %156 = vmatpush1.msra.mxu0 %v110
  %157 = vmatprep.subr.mxu0 0.0
  %158 = vmatpush2.msra.mxu0 0.0
  %159 = vmatprep.subr.mxu0 0.0
  %160 = vmatpush2.msra.mxu0 0.0
  %161 = vmatprep.subr.mxu0 0.0
  %162 = vmatpush2.msra.mxu0 0.0
  %163 = vmatprep.subr.mxu0 0.0
  %164 = vmatpush2.msra.mxu0 0.0
  %165 = vmatprep.subr.mxu0 0.0
  %166 = vmatpush2.msra.mxu0 0.0
  %167 = vmatprep.subr.mxu0 0.0
  %168 = vmatpush2.msra.mxu0 0.0
  %169 = vmatprep.subr.mxu0 0.0
  %170 = vmatpush2.msra.mxu0 0.0
  %171 = vmatprep.subr.mxu0 0.0
  %172 = vmatpush2.msra.mxu0 0.0
  %173 = vmatprep.subr.mxu0 0.0
  %174 = vmatpush2.msra.mxu0 0.0
  %175 = vmatprep.subr.mxu0 0.0
  %176 = vmatpush2.msra.mxu0 0.0
  %177 = vmatprep.subr.mxu0 0.0
  %178 = vmatpush2.msra.mxu0 0.0
  %179 = vmatprep.subr.mxu0 0.0
  %180 = vmatpush2.msra.mxu0 0.0
  %181 = vmatprep.subr.mxu0 0.0
  %182 = vmatpush2.msra.mxu0 0.0
  %183 = vmatprep.subr.mxu0 0.0
  %184 = vmatpush2.msra.mxu0 0.0
  %185 = vmatprep.subr.mxu0 0.0
  %186 = vmatpush2.msra.mxu0 0.0
  %187 = vmatprep.subr.mxu0 0.0
  %188 = vmatpush2.msra.mxu0 0.0
  %189 = vmatprep.mubr.f32.mxu0 0.0
  %190 = vmatmul.mubr.f32.gmra.mxu0 %v123
  %v191 = vpop.f32.mrf.mxu0
  %v192 = vadd.f32 %v120, %v191
  %v193 = vpop.f32.mrf.mxu0
  %194 = vdwg.mxu0
  %s195 = scalar_lea.vmem %s1, 64
  %v196 = vld [vmem:[%s195] sm:$0xff]
  %v197 = vld [vmem:[%s195 + $0x8] sm:$0xff]
  %v198 = vld [vmem:[%s195 + $0x10] sm:$0xff]
  %v199 = vld [vmem:[%s195 + $0x18] sm:$0xff]
  %s200 = scalar_lea.vmem %s2, 2
  %v201 = vld [vmem:[%s200] sm:$0x1]
  %v203 = vlaneseq
  %v204 = vshrl.u32 %v203, 7
  %v205 = vsub.s32 0, %v204
  %v206 = vrot.slane %v201, %v205
  %v209 = vsel %vm34, %v192, 0
  %211 = vmatprep.subr.mxu0 0.0
  %212 = vmatpush1.msra.mxu0 0.0
  %213 = vmatprep.subr.mxu0 0.0
  %214 = vmatpush1.msra.mxu0 0.0
  %215 = vmatprep.subr.mxu0 0.0
  %216 = vmatpush1.msra.mxu0 0.0
  %217 = vmatprep.subr.mxu0 0.0
  %218 = vmatpush1.msra.mxu0 0.0
  %219 = vmatprep.subr.mxu0 0.0
  %220 = vmatpush1.msra.mxu0 0.0
  %221 = vmatprep.subr.mxu0 0.0
  %222 = vmatpush1.msra.mxu0 0.0
  %223 = vmatprep.subr.mxu0 0.0
  %224 = vmatpush1.msra.mxu0 0.0
  %225 = vmatprep.subr.mxu0 0.0
  %226 = vmatpush1.msra.mxu0 0.0
  %227 = vmatprep.subr.mxu0 0.0
  %228 = vmatpush1.msra.mxu0 0.0
  %229 = vmatprep.subr.mxu0 0.0
  %230 = vmatpush1.msra.mxu0 0.0
  %231 = vmatprep.subr.mxu0 0.0
  %232 = vmatpush1.msra.mxu0 0.0
  %233 = vmatprep.subr.mxu0 0.0
  %234 = vmatpush1.msra.mxu0 0.0
  %235 = vmatprep.subr.mxu0 0.0
  %236 = vmatpush1.msra.mxu0 %v199
  %237 = vmatprep.subr.mxu0 0.0
  %238 = vmatpush1.msra.mxu0 %v198
  %239 = vmatprep.subr.mxu0 0.0
  %240 = vmatpush1.msra.mxu0 %v197
  %241 = vmatprep.subr.mxu0 0.0
  %242 = vmatpush1.msra.mxu0 %v196
  %243 = vmatprep.subr.mxu0 0.0
  %244 = vmatpush2.msra.mxu0 0.0
  %245 = vmatprep.subr.mxu0 0.0
  %246 = vmatpush2.msra.mxu0 0.0
  %247 = vmatprep.subr.mxu0 0.0
  %248 = vmatpush2.msra.mxu0 0.0
  %249 = vmatprep.subr.mxu0 0.0
  %250 = vmatpush2.msra.mxu0 0.0
  %251 = vmatprep.subr.mxu0 0.0
  %252 = vmatpush2.msra.mxu0 0.0
  %253 = vmatprep.subr.mxu0 0.0
  %254 = vmatpush2.msra.mxu0 0.0
  %255 = vmatprep.subr.mxu0 0.0
  %256 = vmatpush2.msra.mxu0 0.0
  %257 = vmatprep.subr.mxu0 0.0
  %258 = vmatpush2.msra.mxu0 0.0
  %259 = vmatprep.subr.mxu0 0.0
  %260 = vmatpush2.msra.mxu0 0.0
  %261 = vmatprep.subr.mxu0 0.0
  %262 = vmatpush2.msra.mxu0 0.0
  %263 = vmatprep.subr.mxu0 0.0
  %264 = vmatpush2.msra.mxu0 0.0
  %265 = vmatprep.subr.mxu0 0.0
  %266 = vmatpush2.msra.mxu0 0.0
  %267 = vmatprep.subr.mxu0 0.0
  %268 = vmatpush2.msra.mxu0 0.0
  %269 = vmatprep.subr.mxu0 0.0
  %270 = vmatpush2.msra.mxu0 0.0
  %271 = vmatprep.subr.mxu0 0.0
  %272 = vmatpush2.msra.mxu0 0.0
  %273 = vmatprep.subr.mxu0 0.0
  %274 = vmatpush2.msra.mxu0 0.0
  %275 = vmatprep.mubr.f32.mxu0 0.0
  %276 = vmatmul.mubr.f32.gmra.mxu0 %v209
  %v277 = vpop.f32.mrf.mxu0
  %v278 = vadd.f32 %v206, %v277
  %v279 = vpop.f32.mrf.mxu0
  %280 = vdwg.mxu0
  %v281 = vmax.f32 %v278, 0.0
  %s282 = scalar_lea.vmem %s1, 96
  %v283 = vld [vmem:[%s282] sm:$0xff]
  %v284 = vld [vmem:[%s282 + $0x8] sm:$0xff]
  %v285 = vld [vmem:[%s282 + $0x10] sm:$0xff]
  %v286 = vld [vmem:[%s282 + $0x18] sm:$0xff]
  %s287 = scalar_lea.vmem %s2, 3
  %v288 = vld [vmem:[%s287] sm:$0x1]
  %v290 = vlaneseq
  %v291 = vshrl.u32 %v290, 7
  %v292 = vsub.s32 0, %v291
  %v293 = vrot.slane %v288, %v292
  %v296 = vsel %vm34, %v281, 0
  %298 = vmatprep.subr.mxu0 0.0
  %299 = vmatpush1.msra.mxu0 0.0
  %300 = vmatprep.subr.mxu0 0.0
  %301 = vmatpush1.msra.mxu0 0.0
  %302 = vmatprep.subr.mxu0 0.0
  %303 = vmatpush1.msra.mxu0 0.0
  %304 = vmatprep.subr.mxu0 0.0
  %305 = vmatpush1.msra.mxu0 0.0
  %306 = vmatprep.subr.mxu0 0.0
  %307 = vmatpush1.msra.mxu0 0.0
  %308 = vmatprep.subr.mxu0 0.0
  %309 = vmatpush1.msra.mxu0 0.0
  %310 = vmatprep.subr.mxu0 0.0
  %311 = vmatpush1.msra.mxu0 0.0
  %312 = vmatprep.subr.mxu0 0.0
  %313 = vmatpush1.msra.mxu0 0.0
  %314 = vmatprep.subr.mxu0 0.0
  %315 = vmatpush1.msra.mxu0 0.0
  %316 = vmatprep.subr.mxu0 0.0
  %317 = vmatpush1.msra.mxu0 0.0
  %318 = vmatprep.subr.mxu0 0.0
  %319 = vmatpush1.msra.mxu0 0.0
  %320 = vmatprep.subr.mxu0 0.0
  %321 = vmatpush1.msra.mxu0 0.0
  %322 = vmatprep.subr.mxu0 0.0
  %323 = vmatpush1.msra.mxu0 %v286
  %324 = vmatprep.subr.mxu0 0.0
  %325 = vmatpush1.msra.mxu0 %v285
  %326 = vmatprep.subr.mxu0 0.0
  %327 = vmatpush1.msra.mxu0 %v284
  %328 = vmatprep.subr.mxu0 0.0
  %329 = vmatpush1.msra.mxu0 %v283
  %330 = vmatprep.subr.mxu0 0.0
  %331 = vmatpush2.msra.mxu0 0.0
  %332 = vmatprep.subr.mxu0 0.0
  %333 = vmatpush2.msra.mxu0 0.0
  %334 = vmatprep.subr.mxu0 0.0
  %335 = vmatpush2.msra.mxu0 0.0
  %336 = vmatprep.subr.mxu0 0.0
  %337 = vmatpush2.msra.mxu0 0.0
  %338 = vmatprep.subr.mxu0 0.0
  %339 = vmatpush2.msra.mxu0 0.0
  %340 = vmatprep.subr.mxu0 0.0
  %341 = vmatpush2.msra.mxu0 0.0
  %342 = vmatprep.subr.mxu0 0.0
  %343 = vmatpush2.msra.mxu0 0.0
  %344 = vmatprep.subr.mxu0 0.0
  %345 = vmatpush2.msra.mxu0 0.0
  %346 = vmatprep.subr.mxu0 0.0
  %347 = vmatpush2.msra.mxu0 0.0
  %348 = vmatprep.subr.mxu0 0.0
  %349 = vmatpush2.msra.mxu0 0.0
  %350 = vmatprep.subr.mxu0 0.0
  %351 = vmatpush2.msra.mxu0 0.0
  %352 = vmatprep.subr.mxu0 0.0
  %353 = vmatpush2.msra.mxu0 0.0
  %354 = vmatprep.subr.mxu0 0.0
  %355 = vmatpush2.msra.mxu0 0.0
  %356 = vmatprep.subr.mxu0 0.0
  %357 = vmatpush2.msra.mxu0 0.0
  %358 = vmatprep.subr.mxu0 0.0
  %359 = vmatpush2.msra.mxu0 0.0
  %360 = vmatprep.subr.mxu0 0.0
  %361 = vmatpush2.msra.mxu0 0.0
  %362 = vmatprep.mubr.f32.mxu0 0.0
  %363 = vmatmul.mubr.f32.gmra.mxu0 %v296
  %v364 = vpop.f32.mrf.mxu0
  %v365 = vadd.f32 %v293, %v364
  %v366 = vpop.f32.mrf.mxu0
  %367 = vdwg.mxu0
  %s368 = scalar_lea.vmem %s1, 128
  %v369 = vld [vmem:[%s368] sm:$0xff]
  %v370 = vld [vmem:[%s368 + $0x8] sm:$0xff]
  %v371 = vld [vmem:[%s368 + $0x10] sm:$0xff]
  %v372 = vld [vmem:[%s368 + $0x18] sm:$0xff]
  %s373 = scalar_lea.vmem %s2, 4
  %v374 = vld [vmem:[%s373] sm:$0x1]
  %v376 = vlaneseq
  %v377 = vshrl.u32 %v376, 7
  %v378 = vsub.s32 0, %v377
  %v379 = vrot.slane %v374, %v378
  %v382 = vsel %vm34, %v365, 0
  %384 = vmatprep.subr.mxu0 0.0
  %385 = vmatpush1.msra.mxu0 0.0
  %386 = vmatprep.subr.mxu0 0.0
  %387 = vmatpush1.msra.mxu0 0.0
  %388 = vmatprep.subr.mxu0 0.0
  %389 = vmatpush1.msra.mxu0 0.0
  %390 = vmatprep.subr.mxu0 0.0
  %391 = vmatpush1.msra.mxu0 0.0
  %392 = vmatprep.subr.mxu0 0.0
  %393 = vmatpush1.msra.mxu0 0.0
  %394 = vmatprep.subr.mxu0 0.0
  %395 = vmatpush1.msra.mxu0 0.0
  %396 = vmatprep.subr.mxu0 0.0
  %397 = vmatpush1.msra.mxu0 0.0
  %398 = vmatprep.subr.mxu0 0.0
  %399 = vmatpush1.msra.mxu0 0.0
  %400 = vmatprep.subr.mxu0 0.0
  %401 = vmatpush1.msra.mxu0 0.0
  %402 = vmatprep.subr.mxu0 0.0
  %403 = vmatpush1.msra.mxu0 0.0
  %404 = vmatprep.subr.mxu0 0.0
  %405 = vmatpush1.msra.mxu0 0.0
  %406 = vmatprep.subr.mxu0 0.0
  %407 = vmatpush1.msra.mxu0 0.0
  %408 = vmatprep.subr.mxu0 0.0
  %409 = vmatpush1.msra.mxu0 %v372
  %410 = vmatprep.subr.mxu0 0.0
  %411 = vmatpush1.msra.mxu0 %v371
  %412 = vmatprep.subr.mxu0 0.0
  %413 = vmatpush1.msra.mxu0 %v370
  %414 = vmatprep.subr.mxu0 0.0
  %415 = vmatpush1.msra.mxu0 %v369
  %416 = vmatprep.subr.mxu0 0.0
  %417 = vmatpush2.msra.mxu0 0.0
  %418 = vmatprep.subr.mxu0 0.0
  %419 = vmatpush2.msra.mxu0 0.0
  %420 = vmatprep.subr.mxu0 0.0
  %421 = vmatpush2.msra.mxu0 0.0
  %422 = vmatprep.subr.mxu0 0.0
  %423 = vmatpush2.msra.mxu0 0.0
  %424 = vmatprep.subr.mxu0 0.0
  %425 = vmatpush2.msra.mxu0 0.0
  %426 = vmatprep.subr.mxu0 0.0
  %427 = vmatpush2.msra.mxu0 0.0
  %428 = vmatprep.subr.mxu0 0.0
  %429 = vmatpush2.msra.mxu0 0.0
  %430 = vmatprep.subr.mxu0 0.0
  %431 = vmatpush2.msra.mxu0 0.0
  %432 = vmatprep.subr.mxu0 0.0
  %433 = vmatpush2.msra.mxu0 0.0
  %434 = vmatprep.subr.mxu0 0.0
  %435 = vmatpush2.msra.mxu0 0.0
  %436 = vmatprep.subr.mxu0 0.0
  %437 = vmatpush2.msra.mxu0 0.0
  %438 = vmatprep.subr.mxu0 0.0
  %439 = vmatpush2.msra.mxu0 0.0
  %440 = vmatprep.subr.mxu0 0.0
  %441 = vmatpush2.msra.mxu0 0.0
  %442 = vmatprep.subr.mxu0 0.0
  %443 = vmatpush2.msra.mxu0 0.0
  %444 = vmatprep.subr.mxu0 0.0
  %445 = vmatpush2.msra.mxu0 0.0
  %446 = vmatprep.subr.mxu0 0.0
  %447 = vmatpush2.msra.mxu0 0.0
  %448 = vmatprep.mubr.f32.mxu0 0.0
  %449 = vmatmul.mubr.f32.gmra.mxu0 %v382
  %v450 = vpop.f32.mrf.mxu0
  %v451 = vadd.f32 %v379, %v450
  %v452 = vpop.f32.mrf.mxu0
  %453 = vdwg.mxu0
  %v454 = vmax.f32 %v451, 0.0
  %s455 = scalar_lea.vmem %s1, 160
  %v456 = vld [vmem:[%s455] sm:$0xff]
  %v457 = vld [vmem:[%s455 + $0x8] sm:$0xff]
  %v458 = vld [vmem:[%s455 + $0x10] sm:$0xff]
  %v459 = vld [vmem:[%s455 + $0x18] sm:$0xff]
  %s460 = scalar_lea.vmem %s2, 5
  %v461 = vld [vmem:[%s460] sm:$0x1]
  %v463 = vlaneseq
  %v464 = vshrl.u32 %v463, 7
  %v465 = vsub.s32 0, %v464
  %v466 = vrot.slane %v461, %v465
  %v469 = vsel %vm34, %v454, 0
  %471 = vmatprep.subr.mxu0 0.0
  %472 = vmatpush1.msra.mxu0 0.0
  %473 = vmatprep.subr.mxu0 0.0
  %474 = vmatpush1.msra.mxu0 0.0
  %475 = vmatprep.subr.mxu0 0.0
  %476 = vmatpush1.msra.mxu0 0.0
  %477 = vmatprep.subr.mxu0 0.0
  %478 = vmatpush1.msra.mxu0 0.0
  %479 = vmatprep.subr.mxu0 0.0
  %480 = vmatpush1.msra.mxu0 0.0
  %481 = vmatprep.subr.mxu0 0.0
  %482 = vmatpush1.msra.mxu0 0.0
  %483 = vmatprep.subr.mxu0 0.0
  %484 = vmatpush1.msra.mxu0 0.0
  %485 = vmatprep.subr.mxu0 0.0
  %486 = vmatpush1.msra.mxu0 0.0
  %487 = vmatprep.subr.mxu0 0.0
  %488 = vmatpush1.msra.mxu0 0.0
  %489 = vmatprep.subr.mxu0 0.0
  %490 = vmatpush1.msra.mxu0 0.0
  %491 = vmatprep.subr.mxu0 0.0
  %492 = vmatpush1.msra.mxu0 0.0
  %493 = vmatprep.subr.mxu0 0.0
  %494 = vmatpush1.msra.mxu0 0.0
  %495 = vmatprep.subr.mxu0 0.0
  %496 = vmatpush1.msra.mxu0 %v459
  %497 = vmatprep.subr.mxu0 0.0
  %498 = vmatpush1.msra.mxu0 %v458
  %499 = vmatprep.subr.mxu0 0.0
  %500 = vmatpush1.msra.mxu0 %v457
  %501 = vmatprep.subr.mxu0 0.0
  %502 = vmatpush1.msra.mxu0 %v456
  %503 = vmatprep.subr.mxu0 0.0
  %504 = vmatpush2.msra.mxu0 0.0
  %505 = vmatprep.subr.mxu0 0.0
  %506 = vmatpush2.msra.mxu0 0.0
  %507 = vmatprep.subr.mxu0 0.0
  %508 = vmatpush2.msra.mxu0 0.0
  %509 = vmatprep.subr.mxu0 0.0
  %510 = vmatpush2.msra.mxu0 0.0
  %511 = vmatprep.subr.mxu0 0.0
  %512 = vmatpush2.msra.mxu0 0.0
  %513 = vmatprep.subr.mxu0 0.0
  %514 = vmatpush2.msra.mxu0 0.0
  %515 = vmatprep.subr.mxu0 0.0
  %516 = vmatpush2.msra.mxu0 0.0
  %517 = vmatprep.subr.mxu0 0.0
  %518 = vmatpush2.msra.mxu0 0.0
  %519 = vmatprep.subr.mxu0 0.0
  %520 = vmatpush2.msra.mxu0 0.0
  %521 = vmatprep.subr.mxu0 0.0
  %522 = vmatpush2.msra.mxu0 0.0
  %523 = vmatprep.subr.mxu0 0.0
  %524 = vmatpush2.msra.mxu0 0.0
  %525 = vmatprep.subr.mxu0 0.0
  %526 = vmatpush2.msra.mxu0 0.0
  %527 = vmatprep.subr.mxu0 0.0
  %528 = vmatpush2.msra.mxu0 0.0
  %529 = vmatprep.subr.mxu0 0.0
  %530 = vmatpush2.msra.mxu0 0.0
  %531 = vmatprep.subr.mxu0 0.0
  %532 = vmatpush2.msra.mxu0 0.0
  %533 = vmatprep.subr.mxu0 0.0
  %534 = vmatpush2.msra.mxu0 0.0
  %535 = vmatprep.mubr.f32.mxu0 0.0
  %536 = vmatmul.mubr.f32.gmra.mxu0 %v469
  %v537 = vpop.f32.mrf.mxu0
  %v538 = vadd.f32 %v466, %v537
  %v539 = vpop.f32.mrf.mxu0
  %540 = vdwg.mxu0
  %v541 = vld [vmem:[%s3] sm:$0x1]
  %v543 = vlaneseq
  %v544 = vshrl.u32 %v543, 7
  %v545 = vsub.s32 0, %v544
  %v546 = vrot.slane %v541, %v545
  %v548 = vmul.f32 %v538, %v546
  %v549 = vsel %vm34, %v548, 0.0
  %550 = vadd.xlane.f32.xlu0 %v549
  %v551 = vpop.xlane.xlu0 %550
  %v552 = vld [vmem:[#allocation2] sm:$0x1]
  %v554 = vlaneseq
  %v555 = vshrl.u32 %v554, 7
  %v556 = vsub.s32 0, %v555
  %v557 = vrot.slane %v552, %v556
  %v559 = vadd.f32 %v551, %v557
  %vm560 = vcmask 7168
  %561 = vst.msk [vmem:[%s5] sm:$0xff] %vm560, %v559
  // Predicated region
  $region22: #{bigger_nn_forward.1} parent=0 // pred_check
    _
  $region23: #{bigger_nn_forward.1} parent=0 // pred_check_branch
    %563 = sbr.rel (0) target = $region25
  $region24: #{bigger_nn_forward.1} parent=0 // pred_region
    _
  $region25: #{bigger_nn_forward.1} parent=0 // pred_fallthru
    _
  // Predicated region
  $region26: #{bigger_nn_forward.1} parent=0 // pred_check
    _
  $region27: #{bigger_nn_forward.1} parent=0 // pred_check_branch
    %565 = sbr.rel (0) target = $region29
  $region28: #{bigger_nn_forward.1} parent=0 // pred_region
    _
  $region29: #{bigger_nn_forward.1} parent=0 // pred_fallthru
    _

</llo_original>
